<compile_context>
chip_gen: v5e
topology: v5e:2x2
jax: 0.10.0
libtpu: 0.0.40
codegen_flags: <defaults>
</compile_context>

<pallas_src>
import jax
import jax.numpy as jnp
from jax.experimental import pallas as pl
from jax.experimental.pallas import tpu as pltpu

SOFT_CLAMP_VALUE = 5.0
_LANE_WIDTHS = (2048, 1024, 512, 256, 128)


def _chip_config():
    """Return (block_elems, vmem_limit_bytes, dual_core) for the local TPU."""
    kind = ""
    try:
        kind = jax.devices()[0].device_kind.lower()
    except Exception:
        pass
    if "v7" in kind or "tpu7" in kind:
        # 2 TC/chip, ~3.2 TB/s HBM, 64 MiB VMEM/TC: 2 MiB/array blocks + dual-core grid.
        return 512 * 1024, 48 << 20, True
    if "v6" in kind:
        # ~1.4 TB/s HBM, 128 MiB VMEM: 2 MiB/array blocks, explicit scoped-VMEM limit.
        return 512 * 1024, 48 << 20, False
    if "v5" in kind:
        # ~0.8 TB/s HBM, 16 MiB default scoped VMEM: 1 MiB/array + explicit limit.
        return 256 * 1024, 32 << 20, False
    # Unknown chip: conservative.
    return 256 * 1024, 32 << 20, False


# ------------------------------ math ------------------------------------- #

def _laplace_math(d1, d2, logb, bmin):
    """Core elementwise math in f32."""
    norm = jnp.sqrt(d1 * d1 + d2 * d2 + bmin * bmin)
    lb = 3.0 * jnp.tanh(logb * (1.0 / 3.0))
    sn = norm * jnp.exp(-lb)
    # SoftClamp(5.0): where sn > 5 -> 5 + log1p(sn - 5). The maximum() guard keeps
    # the untaken branch's log1p argument >= 0 (no spurious NaNs under debug tooling).
    clamped = SOFT_CLAMP_VALUE + jnp.log1p(jnp.maximum(sn - SOFT_CLAMP_VALUE, 0.0))
    sn = jnp.where(sn > SOFT_CLAMP_VALUE, clamped, sn)
    return lb + sn


def _laplace_kernel6(x1_ref, x2_ref, logb_ref, t1_ref, t2_ref, bmin_ref, out_ref):
    f32 = jnp.float32
    d1 = x1_ref[...].astype(f32) - t1_ref[...].astype(f32)
    d2 = x2_ref[...].astype(f32) - t2_ref[...].astype(f32)
    out = _laplace_math(d1, d2, logb_ref[...].astype(f32), bmin_ref[...].astype(f32))
    out_ref[...] = out.astype(out_ref.dtype)


def _laplace_kernel4(d1_ref, d2_ref, logb_ref, bmin_ref, out_ref):
    f32 = jnp.float32
    out = _laplace_math(d1_ref[...].astype(f32), d2_ref[...].astype(f32),
                        logb_ref[...].astype(f32), bmin_ref[...].astype(f32))
    out_ref[...] = out.astype(out_ref.dtype)


def _jnp_laplace6(x1, x2, logb, t1, t2, bmin):
    f32 = jnp.float32
    return _laplace_math(x1.astype(f32) - t1.astype(f32),
                         x2.astype(f32) - t2.astype(f32),
                         logb.astype(f32), bmin.astype(f32))


def _jnp_laplace4(d1, d2, logb, bmin):
    f32 = jnp.float32
    return _laplace_math(d1.astype(f32), d2.astype(f32),
                         logb.astype(f32), bmin.astype(f32))


# --------------------------- pallas plumbing ------------------------------ #

def _run_slab(kernel, slabs, out_dtype, block_rows, width, dual_core, vmem_limit):
    """Run `kernel` over (rows, width) slabs with a 1-D row grid."""
    rows = slabs[0].shape[0]
    grid = (pl.cdiv(rows, block_rows),)
    spec = pl.BlockSpec((block_rows, width), lambda i: (i, 0))

    def call(semantics):
        return pl.pallas_call(
            kernel,
            out_shape=jax.ShapeDtypeStruct((rows, width), out_dtype),
            grid_spec=pltpu.PrefetchScalarGridSpec(
                num_scalar_prefetch=0,
                grid=grid,
                in_specs=[spec] * len(slabs),
                out_specs=spec,
            ),
            compiler_params=pltpu.CompilerParams(
                dimension_semantics=semantics,
                vmem_limit_bytes=vmem_limit,
            ),
        )(*slabs)

    # v7x: shard the row grid across both TensorCores. Single-TC chips (v5e/v6e)
    # keep the portable "arbitrary" semantics (parallel vs arbitrary is a no-op there).
    semantics = (pltpu.CORE_PARALLEL,) if (dual_core and grid[0] >= 2) else ("arbitrary",)
    try:
        return call(semantics)
    except Exception:
        if semantics == ("arbitrary",):
            raise
        return call(("arbitrary",))  # portable fallback if CORE_PARALLEL is rejected


def _elementwise_call(kernel, jnp_math, arrays):
    """Lay out flat arrays as lane-dense 2-D slabs and apply the Pallas kernel."""
    shape = arrays[0].shape
    # Output dtype follows the first operand (matching the previous behaviour).
    out_dtype = arrays[0].dtype
    for a in arrays:
        if a.shape != shape:
            raise ValueError("all Laplace inputs must share the same shape")
    n = arrays[0].size
    block_elems, vmem_limit, dual_core = _chip_config()

    flats = [a.reshape(-1) for a in arrays]  # contiguous reshape: free

    if n % 128 == 0:
        # Aligned: zero-copy lane-dense slab (single block if it fits the budget).
        width = next(w for w in _LANE_WIDTHS if n % w == 0)
        rows = n // width
        block_rows = rows if n <= block_elems else max(block_elems // width, 8)
        slabs = [f.reshape(rows, width) for f in flats]
        out = _run_slab(kernel, slabs, out_dtype, block_rows, width,
                        dual_core, vmem_limit)
        return out.reshape(shape)

    if n <= block_elems:
        # Tiny non-aligned input: pad to a (rows, 128) slab, single block.
        # Pad/slice cost is negligible at this size.
        n_pad = ((n + 127) // 128) * 128
        rows = n_pad // 128
        slabs = [jnp.pad(f, (0, n_pad - n)).reshape(rows, 128) for f in flats]
        out = _run_slab(kernel, slabs, out_dtype, rows, 128, dual_core, vmem_limit)
        return out.reshape(-1)[:n].reshape(shape)

    # Large non-aligned input: kernel on the 2048-aligned prefix, fused jnp on the
    # short tail (< 2048 elems). Avoids padding six full arrays + slicing the output.
    width = _LANE_WIDTHS[0]
    n_main = (n // width) * width
    rows = n_main // width
    block_rows = rows if n_main <= block_elems else max(block_elems // width, 8)
    mains = [jax.lax.slice(f, (0,), (n_main,)).reshape(rows, width) for f in flats]
    main_out = _run_slab(kernel, mains, out_dtype, block_rows, width,
                         dual_core, vmem_limit)
    tails = [jax.lax.slice(f, (n_main,), (n,)) for f in flats]
    tail_out = jnp_math(*tails).astype(out_dtype)
    return jnp.concatenate([main_out.reshape(-1), tail_out]).reshape(shape)


# ------------------------------ public API -------------------------------- #

def laplace_loss(x1, x2, logb, t1, t2, bmin):
    """Elementwise Laplace loss; signature matches the PyTorch module forward."""
    return _elementwise_call(_laplace_kernel6, _jnp_laplace6,
                             (x1, x2, logb, t1, t2, bmin))


def laplace_loss_from_diffs(d1, d2, logb, bmin):
    """Variant taking precomputed d1=x1-t1, d2=x2-t2: 5 HBM streams instead of 7
    (~29% less traffic for this memory-bound kernel)."""
    return _elementwise_call(_laplace_kernel4, _jnp_laplace4,
                             (d1, d2, logb, bmin))


def _reference(x1, x2, logb, t1, t2, bmin):
    norm = jnp.sqrt((x1 - t1) ** 2 + (x2 - t2) ** 2 + bmin ** 2)
    lb = 3.0 * jnp.tanh(logb / 3.0)
    sn = norm * jnp.exp(-lb)
    sn = jnp.where(sn > SOFT_CLAMP_VALUE,
                   SOFT_CLAMP_VALUE + jnp.log(1.0 - SOFT_CLAMP_VALUE + sn),
                   sn)
    return lb + sn


if __name__ == "__main__":
    key = jax.random.PRNGKey(0)
    ks = jax.random.split(key, 6)

    # Main case: a small batch of regression fields (128-aligned element count).
    shape = (2, 4, 16, 16)
    x1 = jax.random.normal(ks[0], shape, jnp.float32) * 2.0
    x2 = jax.random.normal(ks[1], shape, jnp.float32) * 2.0
    logb = jax.random.normal(ks[2], shape, jnp.float32)
    t1 = jax.random.normal(ks[3], shape, jnp.float32) * 2.0
    t2 = jax.random.normal(ks[4], shape, jnp.float32) * 2.0
    bmin = jnp.abs(jax.random.normal(ks[5], shape, jnp.float32)) * 0.5

    out = jax.block_until_ready(laplace_loss(x1, x2, logb, t1, t2, bmin))
    ref = _reference(x1, x2, logb, t1, t2, bmin)
    assert out.shape == shape
    assert out.dtype == x1.dtype
    assert jnp.allclose(out, ref, atol=1e-4, rtol=1e-4), "mismatch vs reference"

    # Secondary check: tiny, non-128-aligned element count (padded single-block path).
    shape2 = (3, 5, 7)
    k2 = jax.random.split(ks[5], 6)
    args2 = [jax.random.normal(k2[i], shape2, jnp.float32) for i in range(5)]
    args2.append(jnp.abs(jax.random.normal(k2[5], shape2, jnp.float32)) * 0.5)
    out2 = jax.block_until_ready(laplace_loss(*args2))
    ref2 = _reference(*args2)
    assert out2.shape == shape2
    assert jnp.allclose(out2, ref2, atol=1e-4, rtol=1e-4), "mismatch (odd small shape)"

    # Third check: larger, non-128-aligned count (aligned-prefix + jnp-tail path).
    shape3 = (3, 2, 313, 313)
    k3 = jax.random.split(k2[0], 6)
    args3 = [jax.random.normal(k3[i], shape3, jnp.float32) for i in range(5)]
    args3.append(jnp.abs(jax.random.normal(k3[5], shape3, jnp.float32)) * 0.5)
    out3 = jax.block_until_ready(laplace_loss(*args3))
    ref3 = _reference(*args3)
    assert out3.shape == shape3
    assert jnp.allclose(out3, ref3, atol=1e-4, rtol=1e-4), "mismatch (large odd shape)"

    # Fourth check: reduced-stream variant (precomputed diffs).
    out4 = jax.block_until_ready(
        laplace_loss_from_diffs(x1 - t1, x2 - t2, logb, bmin))
    assert jnp.allclose(out4, ref, atol=1e-4, rtol=1e-4), "mismatch (diff variant)"

    print("KERNEL_OK")
</pallas_src>

<mosaic_0001>
module attributes {stable_mosaic.version = 11 : i64} {
  func.func @_laplace_kernel6(%arg0: i32, %arg1: memref<1x2048xf32, #tpu.memory_space<vmem>>, %arg2: memref<1x2048xf32, #tpu.memory_space<vmem>>, %arg3: memref<1x2048xf32, #tpu.memory_space<vmem>>, %arg4: memref<1x2048xf32, #tpu.memory_space<vmem>>, %arg5: memref<1x2048xf32, #tpu.memory_space<vmem>>, %arg6: memref<1x2048xf32, #tpu.memory_space<vmem>>, %arg7: memref<1x2048xf32, #tpu.memory_space<vmem>>) attributes {dimension_semantics = [#tpu.dimension_semantics<arbitrary>], iteration_bounds = array<i64: 1>, scalar_prefetch = 0 : i64, scratch_operands = 0 : i64, tpu.core_type = #tpu.core_type<tc>, window_params = [{transform_indices = @transform_0, window_bounds = array<i64: 1, 2048>}, {transform_indices = @transform_1, window_bounds = array<i64: 1, 2048>}, {transform_indices = @transform_2, window_bounds = array<i64: 1, 2048>}, {transform_indices = @transform_3, window_bounds = array<i64: 1, 2048>}, {transform_indices = @transform_4, window_bounds = array<i64: 1, 2048>}, {transform_indices = @transform_5, window_bounds = array<i64: 1, 2048>}, {transform_indices = @transform_6, window_bounds = array<i64: 1, 2048>}]} {
    %c0 = arith.constant 0 : index
    %c0_0 = arith.constant 0 : index
    %0 = vector.load %arg1[%c0, %c0_0] : memref<1x2048xf32, #tpu.memory_space<vmem>>, vector<1x2048xf32>
    %c0_1 = arith.constant 0 : index
    %c0_2 = arith.constant 0 : index
    %1 = vector.load %arg4[%c0_1, %c0_2] : memref<1x2048xf32, #tpu.memory_space<vmem>>, vector<1x2048xf32>
    %2 = arith.subf %0, %1 : vector<1x2048xf32>
    %c0_3 = arith.constant 0 : index
    %c0_4 = arith.constant 0 : index
    %3 = vector.load %arg2[%c0_3, %c0_4] : memref<1x2048xf32, #tpu.memory_space<vmem>>, vector<1x2048xf32>
    %c0_5 = arith.constant 0 : index
    %c0_6 = arith.constant 0 : index
    %4 = vector.load %arg5[%c0_5, %c0_6] : memref<1x2048xf32, #tpu.memory_space<vmem>>, vector<1x2048xf32>
    %5 = arith.subf %3, %4 : vector<1x2048xf32>
    %c0_7 = arith.constant 0 : index
    %c0_8 = arith.constant 0 : index
    %6 = vector.load %arg3[%c0_7, %c0_8] : memref<1x2048xf32, #tpu.memory_space<vmem>>, vector<1x2048xf32>
    %c0_9 = arith.constant 0 : index
    %c0_10 = arith.constant 0 : index
    %7 = vector.load %arg6[%c0_9, %c0_10] : memref<1x2048xf32, #tpu.memory_space<vmem>>, vector<1x2048xf32>
    %8 = arith.mulf %2, %2 : vector<1x2048xf32>
    %9 = arith.mulf %5, %5 : vector<1x2048xf32>
    %10 = arith.addf %8, %9 : vector<1x2048xf32>
    %11 = arith.mulf %7, %7 : vector<1x2048xf32>
    %12 = arith.addf %10, %11 : vector<1x2048xf32>
    %13 = math.sqrt %12 : vector<1x2048xf32>
    %cst = arith.constant 0.333333343 : f32
    %14 = vector.broadcast %cst : f32 to vector<1x2048xf32>
    %15 = arith.mulf %6, %14 : vector<1x2048xf32>
    %16 = math.tanh %15 : vector<1x2048xf32>
    %cst_11 = arith.constant 3.000000e+00 : f32
    %17 = vector.broadcast %cst_11 : f32 to vector<1x2048xf32>
    %18 = arith.mulf %17, %16 : vector<1x2048xf32>
    %cst_12 = arith.constant 0.000000e+00 : f32
    %19 = vector.broadcast %cst_12 : f32 to vector<1x2048xf32>
    %20 = arith.subf %19, %18 : vector<1x2048xf32>
    %21 = math.exp %20 : vector<1x2048xf32>
    %22 = arith.mulf %13, %21 : vector<1x2048xf32>
    %cst_13 = arith.constant 5.000000e+00 : f32
    %23 = vector.broadcast %cst_13 : f32 to vector<1x2048xf32>
    %24 = arith.subf %22, %23 : vector<1x2048xf32>
    %cst_14 = arith.constant 0.000000e+00 : f32
    %25 = vector.broadcast %cst_14 : f32 to vector<1x2048xf32>
    %26 = arith.maximumf %24, %25 : vector<1x2048xf32>
    %27 = math.log1p %26 : vector<1x2048xf32>
    %cst_15 = arith.constant 5.000000e+00 : f32
    %28 = vector.broadcast %cst_15 : f32 to vector<1x2048xf32>
    %29 = arith.addf %28, %27 : vector<1x2048xf32>
    %cst_16 = arith.constant 5.000000e+00 : f32
    %30 = vector.broadcast %cst_16 : f32 to vector<1x2048xf32>
    %31 = arith.cmpf ogt, %22, %30 : vector<1x2048xf32>
    %32 = arith.select %31, %29, %22 : vector<1x2048xi1>, vector<1x2048xf32>
    %33 = arith.addf %18, %32 : vector<1x2048xf32>
    %c0_17 = arith.constant 0 : index
    %c0_18 = arith.constant 0 : index
    %34 = vector.load %arg7[%c0_17, %c0_18] : memref<1x2048xf32, #tpu.memory_space<vmem>>, vector<1x2048xf32>
    tpu.vector_store %arg7[%c0_17, %c0_18], %33 {strides = array<i32>} : memref<1x2048xf32, #tpu.memory_space<vmem>>, vector<1x2048xf32>,
    return
  }
  func.func @transform_0(%arg0: i32) -> (i32, i32) {
    %c0_i32 = arith.constant 0 : i32
    %c0_i32_0 = arith.constant 0 : i32
    return %arg0, %c0_i32 : i32, i32
  }
  func.func @transform_1(%arg0: i32) -> (i32, i32) {
    %c0_i32 = arith.constant 0 : i32
    %c0_i32_0 = arith.constant 0 : i32
    return %arg0, %c0_i32 : i32, i32
  }
  func.func @transform_2(%arg0: i32) -> (i32, i32) {
    %c0_i32 = arith.constant 0 : i32
    %c0_i32_0 = arith.constant 0 : i32
    return %arg0, %c0_i32 : i32, i32
  }
  func.func @transform_3(%arg0: i32) -> (i32, i32) {
    %c0_i32 = arith.constant 0 : i32
    %c0_i32_0 = arith.constant 0 : i32
    return %arg0, %c0_i32 : i32, i32
  }
  func.func @transform_4(%arg0: i32) -> (i32, i32) {
    %c0_i32 = arith.constant 0 : i32
    %c0_i32_0 = arith.constant 0 : i32
    return %arg0, %c0_i32 : i32, i32
  }
  func.func @transform_5(%arg0: i32) -> (i32, i32) {
    %c0_i32 = arith.constant 0 : i32
    %c0_i32_0 = arith.constant 0 : i32
    return %arg0, %c0_i32 : i32, i32
  }
  func.func @transform_6(%arg0: i32) -> (i32, i32) {
    %c0_i32 = arith.constant 0 : i32
    %c0_i32_0 = arith.constant 0 : i32
    return %arg0, %c0_i32 : i32, i32
  }
}

</mosaic_0001>

<llo_original>
// kernel: tpu_custom_call.1
$region0: #{tpu_custom_call.1}
  #allocation0 [shape = 'u32[]', space=smem, size = 0x4, offset = 0x4, fixed_abs, tag = 'smem constant byte address 0x4 - core index']
  #allocation1 [shape = 'u32[72,128]{1,0:T(1,128)}', space=vmem, size = 0x9000, scoped, tag = 'internal scratch']
  %s0 = inlined_call_operand.hbm [shape: f32[1,2048], index: 0, kind: input, shape index: {}]
  %s1 = inlined_call_operand.hbm [shape: f32[1,2048], index: 1, kind: input, shape index: {}]
  %s2 = inlined_call_operand.hbm [shape: f32[1,2048], index: 2, kind: input, shape index: {}]
  %s3 = inlined_call_operand.hbm [shape: f32[1,2048], index: 3, kind: input, shape index: {}]
  %s4 = inlined_call_operand.hbm [shape: f32[1,2048], index: 4, kind: input, shape index: {}]
  %s5 = inlined_call_operand.hbm [shape: f32[1,2048], index: 5, kind: input, shape index: {}]
  %s6 = inlined_call_operand.hbm [shape: f32[1,2048], index: 6, kind: output, shape index: {}]
  %s7 = sld [smem:[#allocation0]]
  $region58: #{tpu_custom_call.1} parent=0
    _
  %s9 = ssub.s32 1, %s7
  %s10 = scalar_select 0, %s9, %s7
  $region1: #{tpu_custom_call.1} parent=0
    #allocation2 [shape = 'u8[8192]{0}', space=vmem, size = 0x2000, scoped, tag = 'input window, operand 0, single buffered']
    #allocation3 [shape = 's32[1]{0}', space=sflag, size = 0x4, scoped, tag = 'scoped memory for tpu_custom_call.1']
    #allocation4 [shape = 's32[1]{0}', space=sflag, size = 0x4, scoped, tag = 'scoped memory for tpu_custom_call.1']
    #allocation5 [shape = 'u8[8192]{0}', space=vmem, size = 0x2000, scoped, tag = 'input window, operand 1, single buffered']
    #allocation6 [shape = 's32[1]{0}', space=sflag, size = 0x4, scoped, tag = 'scoped memory for tpu_custom_call.1']
    #allocation7 [shape = 'u8[8192]{0}', space=vmem, size = 0x2000, scoped, tag = 'input window, operand 2, single buffered']
    #allocation8 [shape = 'u8[8192]{0}', space=vmem, size = 0x2000, scoped, tag = 'input window, operand 3, single buffered']
    #allocation9 [shape = 's32[1]{0}', space=sflag, size = 0x4, scoped, tag = 'scoped memory for tpu_custom_call.1']
    #allocation10 [shape = 'u8[8192]{0}', space=vmem, size = 0x2000, scoped, tag = 'input window, operand 4, single buffered']
    #allocation11 [shape = 'u8[8192]{0}', space=vmem, size = 0x2000, scoped, tag = 'input window, operand 5, single buffered']
    #allocation12 [shape = 's32[1]{0}', space=sflag, size = 0x4, scoped, tag = 'scoped memory for tpu_custom_call.1']
    #allocation13 [shape = 'u8[8192]{0}', space=vmem, size = 0x2000, scoped, tag = 'output window, operand 0, single buffered']
    %11 = vsyncpa [#allocation3], 0
    %12 = vsyncpa [#allocation6], 0
    %13 = vsyncpa [#allocation9], 0
    %14 = vsyncpa [#allocation12], 0
    %15 = vsyncpa [#allocation4], 0
    // Predicated region
    $region2: #{tpu_custom_call.1} parent=1 // pred_check
      _
    $region3: #{tpu_custom_call.1} parent=1 // pred_check_branch
      %17 = sbr.rel (0) target = $region5
    $region4: #{tpu_custom_call.1} parent=1 // pred_region
      %19 = vsyncadd [#allocation3], 0
      %s21 = sshll.u32 %s0, 4
      %s22 = int_to_ptr.hbm [resolvable:$true] %s21
      %s23 = sshll.u32 [#allocation2], 4
      %s24 = int_to_ptr.vmem [resolvable:$true] %s23
      %26 = dma.hbm_to_vmem [thread:$0]  %s22, 256, %s24, [#allocation3]
    $region5: #{tpu_custom_call.1} parent=1 // pred_fallthru
      _
    // Predicated region
    $region6: #{tpu_custom_call.1} parent=1 // pred_check
      _
    $region7: #{tpu_custom_call.1} parent=1 // pred_check_branch
      %28 = sbr.rel (0) target = $region9
    $region8: #{tpu_custom_call.1} parent=1 // pred_region
      %30 = vsyncadd [#allocation6], 0
      %s32 = sshll.u32 %s1, 4
      %s33 = int_to_ptr.hbm [resolvable:$true] %s32
      %s34 = sshll.u32 [#allocation5], 4
      %s35 = int_to_ptr.vmem [resolvable:$true] %s34
      %37 = dma.hbm_to_vmem [thread:$0]  %s33, 256, %s35, [#allocation6]
    $region9: #{tpu_custom_call.1} parent=1 // pred_fallthru
      _
    // Predicated region
    $region10: #{tpu_custom_call.1} parent=1 // pred_check
      _
    $region11: #{tpu_custom_call.1} parent=1 // pred_check_branch
      %39 = sbr.rel (0) target = $region13
    $region12: #{tpu_custom_call.1} parent=1 // pred_region
      %41 = vsyncadd [#allocation6], 0
      %s43 = sshll.u32 %s2, 4
      %s44 = int_to_ptr.hbm [resolvable:$true] %s43
      %s45 = sshll.u32 [#allocation7], 4
      %s46 = int_to_ptr.vmem [resolvable:$true] %s45
      %48 = dma.hbm_to_vmem [thread:$0]  %s44, 256, %s46, [#allocation6]
    $region13: #{tpu_custom_call.1} parent=1 // pred_fallthru
      _
    // Predicated region
    $region14: #{tpu_custom_call.1} parent=1 // pred_check
      _
    $region15: #{tpu_custom_call.1} parent=1 // pred_check_branch
      %50 = sbr.rel (0) target = $region17
    $region16: #{tpu_custom_call.1} parent=1 // pred_region
      %52 = vsyncadd [#allocation9], 0
      %s54 = sshll.u32 %s3, 4
      %s55 = int_to_ptr.hbm [resolvable:$true] %s54
      %s56 = sshll.u32 [#allocation8], 4
      %s57 = int_to_ptr.vmem [resolvable:$true] %s56
      %59 = dma.hbm_to_vmem [thread:$0]  %s55, 256, %s57, [#allocation9]
    $region17: #{tpu_custom_call.1} parent=1 // pred_fallthru
      _
    // Predicated region
    $region18: #{tpu_custom_call.1} parent=1 // pred_check
      _
    $region19: #{tpu_custom_call.1} parent=1 // pred_check_branch
      %61 = sbr.rel (0) target = $region21
    $region20: #{tpu_custom_call.1} parent=1 // pred_region
      %63 = vsyncadd [#allocation9], 0
      %s65 = sshll.u32 %s4, 4
      %s66 = int_to_ptr.hbm [resolvable:$true] %s65
      %s67 = sshll.u32 [#allocation10], 4
      %s68 = int_to_ptr.vmem [resolvable:$true] %s67
      %70 = dma.hbm_to_vmem [thread:$0]  %s66, 256, %s68, [#allocation9]
    $region21: #{tpu_custom_call.1} parent=1 // pred_fallthru
      _
    // Predicated region
    $region22: #{tpu_custom_call.1} parent=1 // pred_check
      _
    $region23: #{tpu_custom_call.1} parent=1 // pred_check_branch
      %72 = sbr.rel (0) target = $region25
    $region24: #{tpu_custom_call.1} parent=1 // pred_region
      %74 = vsyncadd [#allocation12], 0
      %s76 = sshll.u32 %s5, 4
      %s77 = int_to_ptr.hbm [resolvable:$true] %s76
      %s78 = sshll.u32 [#allocation11], 4
      %s79 = int_to_ptr.vmem [resolvable:$true] %s78
      %81 = dma.hbm_to_vmem [thread:$0]  %s77, 256, %s79, [#allocation12]
    $region25: #{tpu_custom_call.1} parent=1 // pred_fallthru
      _
    // Predicated region
    $region26: #{tpu_custom_call.1} parent=1 // pred_check
      _
    $region27: #{tpu_custom_call.1} parent=1 // pred_check_branch
      %83 = sbr.rel (0) target = $region29
    $region28: #{tpu_custom_call.1} parent=1 // pred_region
      %85 = dma.done [#allocation3], 256
    $region29: #{tpu_custom_call.1} parent=1 // pred_fallthru
      _
    // Predicated region
    $region30: #{tpu_custom_call.1} parent=1 // pred_check
      _
    $region31: #{tpu_custom_call.1} parent=1 // pred_check_branch
      %87 = sbr.rel (0) target = $region33
    $region32: #{tpu_custom_call.1} parent=1 // pred_region
      %89 = dma.done [#allocation6], 256
    $region33: #{tpu_custom_call.1} parent=1 // pred_fallthru
      _
    // Predicated region
    $region34: #{tpu_custom_call.1} parent=1 // pred_check
      _
    $region35: #{tpu_custom_call.1} parent=1 // pred_check_branch
      %91 = sbr.rel (0) target = $region37
    $region36: #{tpu_custom_call.1} parent=1 // pred_region
      %93 = dma.done [#allocation6], 256
    $region37: #{tpu_custom_call.1} parent=1 // pred_fallthru
      _
    // Predicated region
    $region38: #{tpu_custom_call.1} parent=1 // pred_check
      _
    $region39: #{tpu_custom_call.1} parent=1 // pred_check_branch
      %95 = sbr.rel (0) target = $region41
    $region40: #{tpu_custom_call.1} parent=1 // pred_region
      %97 = dma.done [#allocation9], 256
    $region41: #{tpu_custom_call.1} parent=1 // pred_fallthru
      _
    // Predicated region
    $region42: #{tpu_custom_call.1} parent=1 // pred_check
      _
    $region43: #{tpu_custom_call.1} parent=1 // pred_check_branch
      %99 = sbr.rel (0) target = $region45
    $region44: #{tpu_custom_call.1} parent=1 // pred_region
      %101 = dma.done [#allocation9], 256
    $region45: #{tpu_custom_call.1} parent=1 // pred_fallthru
      _
    // Predicated region
    $region46: #{tpu_custom_call.1} parent=1 // pred_check
      _
    $region47: #{tpu_custom_call.1} parent=1 // pred_check_branch
      %103 = sbr.rel (0) target = $region49
    $region48: #{tpu_custom_call.1} parent=1 // pred_region
      %105 = dma.done [#allocation12], 256
    $region49: #{tpu_custom_call.1} parent=1 // pred_fallthru
      _
    %v106 = vld [vmem:[#allocation2] sm:$0xff]
    %v107 = vld [vmem:[#allocation2 + $0x8] sm:$0xff]
    %v108 = vld [vmem:[#allocation8] sm:$0xff]
    %v109 = vld [vmem:[#allocation8 + $0x8] sm:$0xff]
    %v110 = vsub.f32 %v106, %v108
    %v111 = vsub.f32 %v107, %v109
    %v112 = vld [vmem:[#allocation5] sm:$0xff]
    %v113 = vld [vmem:[#allocation5 + $0x8] sm:$0xff]
    %v114 = vld [vmem:[#allocation10] sm:$0xff]
    %v115 = vld [vmem:[#allocation10 + $0x8] sm:$0xff]
    %v116 = vsub.f32 %v112, %v114
    %v117 = vsub.f32 %v113, %v115
    %v118 = vld [vmem:[#allocation7] sm:$0xff]
    %v119 = vld [vmem:[#allocation7 + $0x8] sm:$0xff]
    %v120 = vld [vmem:[#allocation11] sm:$0xff]
    %v121 = vld [vmem:[#allocation11 + $0x8] sm:$0xff]
    %v122 = vmul.f32 %v110, %v110
    %v123 = vmul.f32 %v111, %v111
    %v124 = vmul.f32 %v116, %v116
    %v125 = vmul.f32 %v117, %v117
    %v126 = vadd.f32 %v122, %v124
    %v127 = vadd.f32 %v123, %v125
    %v128 = vmul.f32 %v120, %v120
    %v129 = vmul.f32 %v121, %v121
    %v130 = vadd.f32 %v126, %v128
    %v131 = vadd.f32 %v127, %v129
    %v132 = vrsqrt.pop %v130
    %v133 = vmul.f32 %v132, %v130
    %v134 = vmul.f32 %v133, %v132
    %v135 = vmul.f32 0.5, %v134
    %v136 = vsub.f32 1.5, %v135
    %v137 = vmul.f32 %v132, %v136
    %v138 = vmul.f32 %v130, %v137
    %vm139 = vcmp.eq.f32.partialorder %v130, inf
    %v140 = vsel %vm139, %v130, %v138
    %vm141 = vcmp.eq.f32.partialorder %v130, 0.0
    %v142 = vand.u32 %v130, 2147483648
    %v143 = vsel %vm141, %v142, %v140
    %v144 = vrsqrt.pop %v131
    %v145 = vmul.f32 %v144, %v131
    %v146 = vmul.f32 %v145, %v144
    %v147 = vmul.f32 0.5, %v146
    %v148 = vsub.f32 1.5, %v147
    %v149 = vmul.f32 %v144, %v148
    %v150 = vmul.f32 %v131, %v149
    %vm151 = vcmp.eq.f32.partialorder %v131, inf
    %v152 = vsel %vm151, %v131, %v150
    %vm153 = vcmp.eq.f32.partialorder %v131, 0.0
    %v154 = vand.u32 %v131, 2147483648
    %v155 = vsel %vm153, %v154, %v152
    %v156 = vmul.f32 %v118, 0.33333334
    %v157 = vmul.f32 %v119, 0.33333334
    %v158 = vtanh.pop %v156
    %v159 = vtanh.pop %v157
    %v160 = vmul.f32 %v158, 3.0
    %v161 = vmul.f32 %v159, 3.0
    %v162 = vsub.f32 0.0, %v160
    %v163 = vsub.f32 0.0, %v161
    %v164 = vmul.f32 %v162, 1.442695
    %v165 = vpow.pop %v164
    %v166 = vmul.f32 %v163, 1.442695
    %v167 = vpow.pop %v166
    %v168 = vmul.f32 %v143, %v165
    %v169 = vmul.f32 %v155, %v167
    %v170 = vsub.f32 %v168, 5.0
    %v171 = vsub.f32 %v169, 5.0
    %v172 = vmax.f32 %v170, 0.0
    %v173 = vmax.f32 %v171, 0.0
    %v174 = vadd.f32 %v172, 1.0
    %v175 = vlog2.pop %v174
    %v176 = vmul.f32 %v175, 0.6931472
    %v177 = vmul.f32 -0.5, %v172
    %v178 = vadd.f32 %v177, 1.0
    %v179 = vmul.f32 %v178, %v172
    %v180 = vand.u32 2147483647, %v172
    %vm181 = vcmp.lt.f32.partialorder %v180, 0.0004427343
    %v182 = vsel %vm181, %v179, %v176
    %v183 = vadd.f32 %v173, 1.0
    %v184 = vlog2.pop %v183
    %v185 = vmul.f32 %v184, 0.6931472
    %v186 = vmul.f32 -0.5, %v173
    %v187 = vadd.f32 %v186, 1.0
    %v188 = vmul.f32 %v187, %v173
    %v189 = vand.u32 2147483647, %v173
    %vm190 = vcmp.lt.f32.partialorder %v189, 0.0004427343
    %v191 = vsel %vm190, %v188, %v185
    %v192 = vadd.f32 %v182, 5.0
    %v193 = vadd.f32 %v191, 5.0
    %vm194 = vcmp.gt.f32.partialorder %v168, 5.0
    %vm195 = vcmp.gt.f32.partialorder %v169, 5.0
    %v196 = vsel %vm194, %v192, %v168
    %v197 = vsel %vm195, %v193, %v169
    %v198 = vadd.f32 %v160, %v196
    %v199 = vadd.f32 %v161, %v197
    %200 = vst [vmem:[#allocation13] sm:$0xff] %v198
    %201 = vst [vmem:[#allocation13 + $0x8] sm:$0xff] %v199
    // Predicated region
    $region50: #{tpu_custom_call.1} parent=1 // pred_check
      _
    $region51: #{tpu_custom_call.1} parent=1 // pred_check_branch
      %203 = sbr.rel (0) target = $region53
    $region52: #{tpu_custom_call.1} parent=1 // pred_region
      %205 = vsyncadd [#allocation4], 0
      %s207 = sshll.u32 [#allocation13], 4
      %s208 = int_to_ptr.vmem [resolvable:$true] %s207
      %s209 = sshll.u32 %s6, 4
      %s210 = int_to_ptr.hbm [resolvable:$true] %s209
      %212 = dma.vmem_to_hbm [thread:$0]  %s208, 256, %s210, [#allocation4]
    $region53: #{tpu_custom_call.1} parent=1 // pred_fallthru
      _
    // Predicated region
    $region54: #{tpu_custom_call.1} parent=1 // pred_check
      _
    $region55: #{tpu_custom_call.1} parent=1 // pred_check_branch
      %214 = sbr.rel (0) target = $region57
    $region56: #{tpu_custom_call.1} parent=1 // pred_region
      %216 = dma.done [#allocation4], 256
    $region57: #{tpu_custom_call.1} parent=1 // pred_fallthru
      _
    %217 = vsyncpa [#allocation3], 1
    %218 = vsyncpa [#allocation6], 1
    %219 = vsyncpa [#allocation9], 1
    %220 = vsyncpa [#allocation12], 1
    %221 = vsyncpa [#allocation4], 1

</llo_original>
